<compile_context>
chip_gen: v5e
topology: v5e:2x2
jax: 0.10.0
libtpu: 0.0.40
codegen_flags: <defaults>
</compile_context>

<pallas_src>
import jax
import jax.numpy as jnp
from jax.experimental import pallas as pl
from jax.experimental.pallas import tpu as pltpu


# ----------------------------------------------------------------------------
# Fast path: forward() is the identity on the parameter. No kernel, no copy.
# ----------------------------------------------------------------------------
def taskgraph_forward(task_graph: jax.Array) -> jax.Array:
    """Pallas-free equivalent of TaskGraph.forward(): returns the parameter."""
    return task_graph


# ----------------------------------------------------------------------------
# Pallas copy path (used when the framework requires a kernel-produced output).
# ----------------------------------------------------------------------------
def _copy_kernel(tg_ref, out_ref):
    out_ref[...] = tg_ref[...]


# Single grid-less block for anything whose (in + out) footprint fits easily
# in every chip generation's default scoped VMEM (<= ~16 MiB total).
_SMALL_BYTES = 8 << 20


def _vmem_capacity_bytes() -> int:
    """Physical VMEM of the current chip; conservative (v7x) fallback."""
    try:
        return int(pltpu.get_tpu_info().vmem_capacity_bytes)
    except Exception:  # pragma: no cover - e.g. interpret mode / CPU tracing
        return 64 << 20


def taskgraph_forward_pallas(
    task_graph: jax.Array,
    *,
    row_tile: int | None = None,
    alias_output: bool = False,
) -> jax.Array:
    """Pallas copy of the parameter matrix.

    alias_output=True matches torch semantics (forward() returns the parameter
    storage itself); since an aliased pallas_call would still perform a full
    HBM read + write-back, we skip the kernel entirely in that case.
    """
    n0, n1 = task_graph.shape
    dtype = task_graph.dtype
    itemsize = jnp.dtype(dtype).itemsize
    nbytes = n0 * n1 * itemsize
    # Packed sublane multiple: 8 rows for 32-bit, 16 for bf16, 32 for int8/fp8.
    sub = max(8, 32 // itemsize)

    if alias_output:
        # Aliasing only shares the HBM buffer; the copy's 2x-nbytes traffic
        # would still execute. Returning the parameter is the real win.
        return task_graph

    cost = pl.CostEstimate(flops=0, transcendentals=0, bytes_accessed=2 * nbytes)

    # --- small/medium matrices: one grid-less invocation, whole array block.
    # (block == full array, so the (8,128) divisibility rule does not apply.)
    if row_tile is None and nbytes <= _SMALL_BYTES:
        return pl.pallas_call(
            _copy_kernel,
            out_shape=jax.ShapeDtypeStruct((n0, n1), dtype),
            cost_estimate=cost,
        )(task_graph)

    # --- large matrices: row-tiled, lane-dense (full-width) blocks.
    vmem_cap = _vmem_capacity_bytes()
    # Per-tile budget: ~4 MiB on v7x (64 MiB VMEM), ~8 MiB on v5e/v6e (128 MiB).
    tile_budget = max(1 << 20, min(8 << 20, vmem_cap // 16))

    if row_tile is None:
        row_tile = max(sub, (tile_budget // max(1, n1 * itemsize)) // sub * sub)
        if row_tile >= n0:
            row_tile = n0                          # single full-extent block
        else:
            num_tiles = pl.cdiv(n0, row_tile)
            if num_tiles % 2 == 1:
                # Even tile count so v7x's 2 TensorCores split the grid evenly.
                num_tiles += 1
                rt = pl.cdiv(pl.cdiv(n0, num_tiles), sub) * sub
                row_tile = min(max(sub, rt), row_tile)
    else:
        if row_tile >= n0:
            row_tile = n0
        else:
            row_tile = max(sub, (row_tile // sub) * sub)   # sublane-packed rows

    grid = (pl.cdiv(n0, row_tile),)
    # Scoped-VMEM limit: 2 in + 2 out double-buffered tiles plus headroom,
    # capped at half the physical VMEM (safe on v5e/v6e/v7x alike; avoids
    # v5e's 16 MiB default limit pinning us at tiny tiles).
    tile_bytes = row_tile * n1 * itemsize
    vmem_limit = int(min(vmem_cap // 2, max(16 << 20, 4 * tile_bytes + (4 << 20))))

    return pl.pallas_call(
        _copy_kernel,
        out_shape=jax.ShapeDtypeStruct((n0, n1), dtype),
        grid=grid,
        # Columns span the full width (lane-dense); rows in sublane multiples.
        in_specs=[pl.BlockSpec((row_tile, n1), lambda i: (i, 0))],
        out_specs=pl.BlockSpec((row_tile, n1), lambda i: (i, 0)),
        cost_estimate=cost,
        compiler_params=pltpu.CompilerParams(
            # Independent row tiles: v7x's 2 TCs split the copy; harmless
            # (sequential loop) on single-TC v5e/v6e.
            dimension_semantics=("parallel",),
            vmem_limit_bytes=vmem_limit,
        ),
    )(task_graph)


if __name__ == "__main__":
    # --- primary check: small module size (num_nodes=16), grid-less path ----
    num_nodes = 16
    key = jax.random.PRNGKey(0)
    # Mimics torch.rand(num_nodes, num_nodes): uniform [0, 1), float32.
    task_graph_param = jax.random.uniform(
        key, (num_nodes, num_nodes), dtype=jnp.float32
    )

    out_fast = taskgraph_forward(task_graph_param)            # identity fast path
    out_alias = taskgraph_forward_pallas(task_graph_param, alias_output=True)
    out_pallas = taskgraph_forward_pallas(task_graph_param)   # Pallas copy path
    out_pallas = jax.block_until_ready(out_pallas)

    assert out_pallas.shape == (num_nodes, num_nodes)
    assert out_pallas.dtype == jnp.float32
    assert bool(jnp.all(out_pallas == task_graph_param))
    assert bool(jnp.all(out_fast == task_graph_param))
    assert bool(jnp.all(out_alias == task_graph_param))

    # --- secondary check: explicit tiled (grid > 1, "parallel") f32 path ----
    big_nodes = 512
    big_param = jax.random.uniform(
        jax.random.PRNGKey(0), (big_nodes, big_nodes), dtype=jnp.float32
    )
    out_big = taskgraph_forward_pallas(big_param, row_tile=128)   # grid = (4,)
    out_big = jax.block_until_ready(out_big)
    assert bool(jnp.all(out_big == big_param))

    # --- tertiary check: auto-sized tiled path (> _SMALL_BYTES, even grid) ---
    auto_nodes = 1536                                   # 9 MiB f32 > 8 MiB
    auto_param = jax.random.uniform(
        jax.random.PRNGKey(1), (auto_nodes, auto_nodes), dtype=jnp.float32
    )
    out_auto = jax.block_until_ready(taskgraph_forward_pallas(auto_param))
    assert bool(jnp.all(out_auto == auto_param))

    # --- quaternary check: bf16 sublane rounding (row_tile 100 -> 96) -------
    bf_param = jax.random.uniform(
        jax.random.PRNGKey(2), (512, 512), dtype=jnp.float32
    ).astype(jnp.bfloat16)
    out_bf = jax.block_until_ready(
        taskgraph_forward_pallas(bf_param, row_tile=100)
    )
    assert out_bf.dtype == jnp.bfloat16
    assert bool(jnp.all(out_bf == bf_param))

    print("KERNEL_OK")
</pallas_src>

<mosaic_0001>
module attributes {stable_mosaic.version = 11 : i64} {
  func.func @_copy_kernel(%arg0: memref<16x16xf32, #tpu.memory_space<vmem>>, %arg1: memref<16x16xf32, #tpu.memory_space<vmem>>) attributes {dimension_semantics = [], scalar_prefetch = 0 : i64, scratch_operands = 0 : i64, tpu.core_type = #tpu.core_type<tc>} {
    %c0 = arith.constant 0 : index
    %c0_0 = arith.constant 0 : index
    %0 = vector.load %arg0[%c0, %c0_0] : memref<16x16xf32, #tpu.memory_space<vmem>>, vector<16x16xf32>
    %c0_1 = arith.constant 0 : index
    %c0_2 = arith.constant 0 : index
    %1 = vector.load %arg1[%c0_1, %c0_2] : memref<16x16xf32, #tpu.memory_space<vmem>>, vector<16x16xf32>
    tpu.vector_store %arg1[%c0_1, %c0_2], %0 {strides = array<i32>} : memref<16x16xf32, #tpu.memory_space<vmem>>, vector<16x16xf32>,
    return
  }
}

</mosaic_0001>

<llo_original>
// kernel: tpu_custom_call.1
$region0: #{tpu_custom_call.1}
  #allocation0 [shape = 'u32[]', space=smem, size = 0x4, offset = 0x4, fixed_abs, tag = 'smem constant byte address 0x4 - core index']
  #allocation1 [shape = 'u32[72,128]{1,0:T(1,128)}', space=vmem, size = 0x9000, scoped, tag = 'internal scratch']
  %s0 = inlined_call_operand.hbm [shape: f32[16,16], index: 0, kind: input, shape index: {}]
  %s1 = inlined_call_operand.hbm [shape: f32[16,16], index: 1, kind: output, shape index: {}]
  %s2 = sld [smem:[#allocation0]]
  $region18: #{tpu_custom_call.1} parent=0
    _
  %s4 = ssub.s32 1, %s2
  %s5 = scalar_select 0, %s4, %s2
  $region1: #{tpu_custom_call.1} parent=0
    #allocation2 [shape = 'u8[8192]{0}', space=vmem, size = 0x2000, scoped, tag = 'input window, operand 0, single buffered']
    #allocation3 [shape = 's32[1]{0}', space=sflag, size = 0x4, scoped, tag = 'scoped memory for tpu_custom_call.1']
    #allocation4 [shape = 's32[1]{0}', space=sflag, size = 0x4, scoped, tag = 'scoped memory for tpu_custom_call.1']
    #allocation5 [shape = 'u8[8192]{0}', space=vmem, size = 0x2000, scoped, tag = 'output window, operand 0, single buffered']
    %6 = vsyncpa [#allocation3], 0
    %7 = vsyncpa [#allocation4], 0
    // Predicated region
    $region2: #{tpu_custom_call.1} parent=1 // pred_check
      _
    $region3: #{tpu_custom_call.1} parent=1 // pred_check_branch
      %9 = sbr.rel (0) target = $region5
    $region4: #{tpu_custom_call.1} parent=1 // pred_region
      %11 = vsyncadd [#allocation3], 0
      %s12 = sshll.u32 %s0, 4
      %s13 = int_to_ptr.hbm [resolvable:$true] %s12
      %s14 = sshll.u32 [#allocation2], 4
      %s15 = int_to_ptr.vmem [resolvable:$true] %s14
      %20 = dma.hbm_to_vmem [thread:$0]  %s13, 256, %s15, [#allocation3], 128, 128, 8
    $region5: #{tpu_custom_call.1} parent=1 // pred_fallthru
      _
    // Predicated region
    $region6: #{tpu_custom_call.1} parent=1 // pred_check
      _
    $region7: #{tpu_custom_call.1} parent=1 // pred_check_branch
      %22 = sbr.rel (0) target = $region9
    $region8: #{tpu_custom_call.1} parent=1 // pred_region
      %24 = dma.done [#allocation3], 256
    $region9: #{tpu_custom_call.1} parent=1 // pred_fallthru
      _
    %v25 = vld [vmem:[#allocation2] sm:$0xff]
    %v26 = vld [vmem:[#allocation2 + $0x8] sm:$0xff]
    %vm27 = vcmask 130048
    %28 = vst.msk [vmem:[#allocation5] sm:$0xff] %vm27, %v25
    %29 = vst.msk [vmem:[#allocation5 + $0x8] sm:$0xff] %vm27, %v26
    // Predicated region
    $region10: #{tpu_custom_call.1} parent=1 // pred_check
      _
    $region11: #{tpu_custom_call.1} parent=1 // pred_check_branch
      %31 = sbr.rel (0) target = $region13
    $region12: #{tpu_custom_call.1} parent=1 // pred_region
      %33 = vsyncadd [#allocation4], 0
      %s34 = sshll.u32 [#allocation5], 4
      %s35 = int_to_ptr.vmem [resolvable:$true] %s34
      %s36 = sshll.u32 %s1, 4
      %s37 = int_to_ptr.hbm [resolvable:$true] %s36
      %42 = dma.vmem_to_hbm [thread:$0]  %s35, 256, %s37, [#allocation4], 128, 128, 8
    $region13: #{tpu_custom_call.1} parent=1 // pred_fallthru
      _
    // Predicated region
    $region14: #{tpu_custom_call.1} parent=1 // pred_check
      _
    $region15: #{tpu_custom_call.1} parent=1 // pred_check_branch
      %44 = sbr.rel (0) target = $region17
    $region16: #{tpu_custom_call.1} parent=1 // pred_region
      %46 = dma.done [#allocation4], 256
    $region17: #{tpu_custom_call.1} parent=1 // pred_fallthru
      _
    %47 = vsyncpa [#allocation3], 1
    %48 = vsyncpa [#allocation4], 1

</llo_original>
